<compile_context>
chip_gen: v7x
topology: tpu7x:2x2x1
jax: 0.10.0
libtpu: 0.0.40
codegen_flags: <defaults>
</compile_context>

<pallas_src>
import jax
import jax.numpy as jnp
from jax.experimental import pallas as pl
from jax.experimental.pallas import tpu as pltpu

EPS = 1e-4


def _round_up(x, m):
    return (x + m - 1) // m * m


# ---------------------------------------------------------------------------
# Pallas kernel: one edge tile -> bf16 one-hot gather -> decoder -> weighted -log loss
# ---------------------------------------------------------------------------
def _recon_kernel(idx_ref, w_ref, xt_ref, out_ref, acc_ref):
    step = pl.program_id(0)

    @pl.when(step == 0)
    def _init():
        acc_ref[...] = jnp.zeros_like(acc_ref)

    n_pad = xt_ref.shape[1]
    e_tile = idx_ref.shape[1]

    src = idx_ref[0:1, :]                                   # [1, E_TILE] i32 (lane-dense)
    dst = idx_ref[1:2, :]
    w = w_ref[...]                                          # [1, E_TILE] signed 1/count (0 = pad)

    # One-hot gather matrices with edges on lanes; padded edges carry index -1 and
    # therefore an all-zero column (logit 0, and weight 0 kills the contribution).
    node_iota = jax.lax.broadcasted_iota(jnp.int32, (n_pad, e_tile), 0)
    oh_src = (node_iota == src).astype(jnp.bfloat16)        # 0/1 -> exact in bf16
    oh_dst = (node_iota == dst).astype(jnp.bfloat16)

    # node -> edge gather on the bf16 MXU; x^T stays VMEM resident (constant block index).
    xt = xt_ref[...]                                        # [D_pad, N_pad] bf16
    xs = jnp.dot(xt, oh_src, preferred_element_type=jnp.float32)   # [D_pad, E_TILE] f32
    xd = jnp.dot(xt, oh_dst, preferred_element_type=jnp.float32)

    # decoder logit + loss; for negative edges 1 - sigmoid(v) = sigmoid(-v),
    # the pos/neg kind is encoded in the sign of the precomputed weight.
    v = jnp.sum(xs * xd, axis=0, keepdims=True)             # [1, E_TILE]
    sign = jnp.where(w >= 0.0, 1.0, -1.0)
    s = pl.reciprocal(1.0 + jnp.exp(-(sign * v)), approx=True)     # EUP exp + vrcp
    loss = -jnp.log(EPS + s)

    acc_ref[...] += jnp.abs(w) * loss                       # pure VPU; no per-tile reduce

    @pl.when(step == pl.num_programs(0) - 1)
    def _finalize():
        out_ref[...] = jnp.sum(acc_ref[...], axis=1, keepdims=True)   # single (1,1) store


# ---------------------------------------------------------------------------
# Wrapper (glue: weights / index packing / padding + pallas_call)
# ---------------------------------------------------------------------------
def recon_block_forward(x, pos_edge_index, neg_edge_index, batch, num_graphs,
                        *, edge_tile=2048):
    """Pallas implementation of ReconBlock.forward.

    x              : [N, D] float32 node embeddings
    pos_edge_index : [2, Ep] int32
    neg_edge_index : [2, En] int32
    batch          : [N] int32 graph assignment per node
    num_graphs     : static Python int (= batch.max() + 1)
    Returns a float32 scalar. Fully jittable (num_graphs, edge_tile static).
    """
    x = x.astype(jnp.float32)
    n, d = x.shape
    ep = int(pos_edge_index.shape[1])
    en = int(neg_edge_index.shape[1])
    e_total = ep + en
    assert e_total > 0, "need at least one edge"

    n_pad = _round_up(n, 128)          # contraction dim of the gather matmuls
    d_pad = _round_up(d, 128)          # sublane dim of x^T

    # Edge tiling with bounded padding waste (< 128 dead edges per tile).
    n_tiles = -(-e_total // edge_tile)
    e_tile = _round_up(-(-e_total // n_tiles), 128)
    e_pad = n_tiles * e_tile

    # x^T, bf16, zero-padded: stays VMEM resident; bf16 halves residency footprint and
    # puts the gather matmuls on the single-pass bf16 MXU path.
    xt = jnp.zeros((d_pad, n_pad), jnp.bfloat16).at[:d, :n].set(x.T.astype(jnp.bfloat16))

    src = jnp.concatenate([pos_edge_index[0], neg_edge_index[0]]).astype(jnp.int32)
    dst = jnp.concatenate([pos_edge_index[1], neg_edge_index[1]]).astype(jnp.int32)
    is_neg = jnp.concatenate(
        [jnp.zeros((ep,), jnp.int32), jnp.ones((en,), jnp.int32)])

    # Per-(graph, kind) edge counts -> per-edge signed weight  w_e = ±1/count[seg_e].
    seg = batch.astype(jnp.int32)[src] + is_neg * num_graphs
    counts = jnp.zeros((2 * num_graphs,), jnp.float32).at[seg].add(1.0)
    w = 1.0 / counts[seg]                                     # counts[seg] >= 1 always
    w_signed = jnp.where(is_neg == 1, -w, w)

    pad = e_pad - e_total
    idx = jnp.stack(
        [jnp.pad(src, (0, pad), constant_values=-1),          # -1 => padded edge
         jnp.pad(dst, (0, pad), constant_values=-1)],
        axis=0)                                               # [2, E_pad] i32, lane-dense
    w_arr = jnp.pad(w_signed, (0, pad))[None, :]              # [1, E_pad] f32, 0 on padding

    # VMEM limit derived from actual buffer sizes (capped at 64 MiB -> v7x-safe).
    bytes_idx = 2 * (8 * e_tile * 4)                 # idx tile (sublane-padded), x2 buffers
    bytes_w = 2 * (8 * e_tile * 4)                   # weight tile, x2 buffers
    bytes_x = 2 * (d_pad * n_pad * 2)                # resident x^T (bf16)
    bytes_tmp = 2 * (n_pad * e_tile * 2) + 2 * (d_pad * e_tile * 4) + 8 * (8 * e_tile * 4)
    bytes_acc = 8 * e_tile * 4
    vmem_limit = min(64 << 20, max(32 << 20, 2 * (bytes_idx + bytes_w + bytes_x
                                                  + bytes_tmp + bytes_acc)))

    grid = (e_pad // e_tile,)
    out = pl.pallas_call(
        _recon_kernel,
        out_shape=jax.ShapeDtypeStruct((1, 1), jnp.float32),
        grid_spec=pltpu.PrefetchScalarGridSpec(
            num_scalar_prefetch=0,
            grid=grid,
            in_specs=[
                pl.BlockSpec((2, e_tile), lambda i: (0, i)),      # src/dst indices (lane-dense)
                pl.BlockSpec((1, e_tile), lambda i: (0, i)),      # signed 1/count weights
                pl.BlockSpec((d_pad, n_pad), lambda i: (0, 0)),   # x^T resident in VMEM
            ],
            out_specs=pl.BlockSpec((1, 1), lambda i: (0, 0)),
            scratch_shapes=[
                pltpu.VMEM((1, e_tile), jnp.float32),             # running weighted-loss lanes
            ],
        ),
        compiler_params=pltpu.CompilerParams(
            dimension_semantics=("arbitrary",),     # sequential reduction over edge tiles
            vmem_limit_bytes=vmem_limit,
        ),
    )(idx, w_arr, xt)
    return out[0, 0]


# ---------------------------------------------------------------------------
# Pure-JAX reference (mirrors the PyTorch semantics)
# ---------------------------------------------------------------------------
def _ref_recon_loss(x, pos_edge_index, neg_edge_index, batch, num_graphs):
    def decoder(ei):
        return jax.nn.sigmoid(jnp.sum(x[ei[0]] * x[ei[1]], axis=1))

    def pooled_sum(vals, cluster):
        sums = jax.ops.segment_sum(vals, cluster, num_segments=num_graphs)
        counts = jax.ops.segment_sum(jnp.ones_like(vals), cluster,
                                     num_segments=num_graphs)
        return jnp.sum(sums / jnp.maximum(counts, 1.0))

    pos = pooled_sum(-jnp.log(EPS + decoder(pos_edge_index)),
                     batch[pos_edge_index[0]])
    if int(neg_edge_index.shape[1]) > 0:
        neg = pooled_sum(-jnp.log(EPS + 1.0 - decoder(neg_edge_index)),
                         batch[neg_edge_index[0]])
        return pos + neg
    return pos


# ---------------------------------------------------------------------------
if __name__ == "__main__":
    key = jax.random.PRNGKey(0)
    k_x, k_ps, k_pd, k_ns, k_nd = jax.random.split(key, 5)

    N, D = 16, 32          # nodes, embedding dim
    E_pos, E_neg = 24, 24  # positive / negative edges
    G = 2                  # graphs in the batch

    x = 0.5 * jax.random.normal(k_x, (N, D), dtype=jnp.float32)
    # nodes 0..7 -> graph 0, nodes 8..15 -> graph 1
    batch = jnp.repeat(jnp.arange(G, dtype=jnp.int32), N // G)

    pos_edge_index = jnp.stack(
        [jax.random.randint(k_ps, (E_pos,), 0, N, dtype=jnp.int32),
         jax.random.randint(k_pd, (E_pos,), 0, N, dtype=jnp.int32)])
    neg_edge_index = jnp.stack(
        [jax.random.randint(k_ns, (E_neg,), 0, N, dtype=jnp.int32),
         jax.random.randint(k_nd, (E_neg,), 0, N, dtype=jnp.int32)])

    fwd = jax.jit(recon_block_forward, static_argnames=("num_graphs", "edge_tile"))
    loss = jax.block_until_ready(
        fwd(x, pos_edge_index, neg_edge_index, batch, num_graphs=G))

    ref = _ref_recon_loss(x, pos_edge_index, neg_edge_index, batch, G)
    # tolerance covers the bf16 MXU gather of x and the approximate EUP reciprocal
    # in the in-kernel sigmoid (loss-level error is ~1e-3 relative in practice)
    assert jnp.allclose(loss, ref, rtol=1e-2, atol=1e-2), (loss, ref)

    print("KERNEL_OK")
</pallas_src>

<mosaic_0001>
module attributes {stable_mosaic.version = 11 : i64} {
  func.func private @main(%arg0: i32) attributes {dimension_semantics = [#tpu.dimension_semantics<core_parallel>], iteration_bounds = array<i64: 2>, tpu.core_type = #tpu.core_type<sc_scalar_subcore>, window_params = []} {
    return
  }
}

module attributes {stable_mosaic.version = 11 : i64} {
  func.func private @main(%arg0: i32) attributes {dimension_semantics = [#tpu.dimension_semantics<core_parallel>], iteration_bounds = array<i64: 2>, tpu.core_type = #tpu.core_type<sc_scalar_subcore>, window_params = []} {
    return
  }
}

module attributes {stable_mosaic.version = 11 : i64} {
  func.func @_recon_kernel(%arg0: i32, %arg1: memref<2x128xi32, #tpu.memory_space<vmem>>, %arg2: memref<1x128xf32, #tpu.memory_space<vmem>>, %arg3: memref<128x128xbf16, #tpu.memory_space<vmem>>, %arg4: memref<1x1xf32, #tpu.memory_space<vmem>>, %arg5: memref<1x128xf32, #tpu.memory_space<vmem>>) attributes {dimension_semantics = [#tpu.dimension_semantics<arbitrary>], iteration_bounds = array<i64: 1>, scalar_prefetch = 0 : i64, scratch_operands = 1 : i64, tpu.core_type = #tpu.core_type<tc>, window_params = [{transform_indices = @transform_0, window_bounds = array<i64: 2, 128>}, {transform_indices = @transform_1, window_bounds = array<i64: 1, 128>}, {pipeline_mode = #tpu.pipeline_mode<synchronous>, transform_indices = @transform_2, window_bounds = array<i64: 128, 128>}, {pipeline_mode = #tpu.pipeline_mode<synchronous>, transform_indices = @transform_3, window_bounds = array<i64: 1, 1>}]} {
    %c0_i32 = arith.constant 0 : i32
    %0 = arith.cmpi eq, %arg0, %c0_i32 : i32
    %1 = arith.extui %0 : i1 to i32
    %c0_i32_0 = arith.constant 0 : i32
    %2 = arith.cmpi ne, %1, %c0_i32_0 : i32
    scf.if %2 {
      %cst_22 = arith.constant 0.000000e+00 : f32
      %48 = vector.broadcast %cst_22 : f32 to vector<1x128xf32>
      %c0_23 = arith.constant 0 : index
      %c0_24 = arith.constant 0 : index
      %49 = vector.load %arg5[%c0_23, %c0_24] : memref<1x128xf32, #tpu.memory_space<vmem>>, vector<1x128xf32>
      tpu.vector_store %arg5[%c0_23, %c0_24], %48 {strides = array<i32>} : memref<1x128xf32, #tpu.memory_space<vmem>>, vector<1x128xf32>,
    } else {
    }
    %c0 = arith.constant 0 : index
    %c0_1 = arith.constant 0 : index
    %3 = vector.load %arg1[%c0, %c0_1] : memref<2x128xi32, #tpu.memory_space<vmem>>, vector<1x128xi32>
    %c1 = arith.constant 1 : index
    %c0_2 = arith.constant 0 : index
    %4 = vector.load %arg1[%c1, %c0_2] : memref<2x128xi32, #tpu.memory_space<vmem>>, vector<1x128xi32>
    %c0_3 = arith.constant 0 : index
    %c0_4 = arith.constant 0 : index
    %5 = vector.load %arg2[%c0_3, %c0_4] : memref<1x128xf32, #tpu.memory_space<vmem>>, vector<1x128xf32>
    %6 = tpu.iota {dimensions = array<i32: 0>} : vector<128x128xi32>
    %7 = vector.broadcast %3 : vector<1x128xi32> to vector<128x128xi32>
    %8 = arith.cmpi eq, %6, %7 : vector<128x128xi32>
    %9 = arith.extui %8 : vector<128x128xi1> to vector<128x128xi32>
    %10 = arith.sitofp %9 : vector<128x128xi32> to vector<128x128xf32>
    %11 = arith.truncf %10 : vector<128x128xf32> to vector<128x128xbf16>
    %12 = vector.broadcast %4 : vector<1x128xi32> to vector<128x128xi32>
    %13 = arith.cmpi eq, %6, %12 : vector<128x128xi32>
    %14 = arith.extui %13 : vector<128x128xi1> to vector<128x128xi32>
    %15 = arith.sitofp %14 : vector<128x128xi32> to vector<128x128xf32>
    %16 = arith.truncf %15 : vector<128x128xf32> to vector<128x128xbf16>
    %c0_5 = arith.constant 0 : index
    %c0_6 = arith.constant 0 : index
    %17 = vector.load %arg3[%c0_5, %c0_6] : memref<128x128xbf16, #tpu.memory_space<vmem>>, vector<128x128xbf16>
    %cst = arith.constant dense<0.000000e+00> : vector<128x128xf32>
    %18 = tpu.matmul %17, %11, %cst {dimension_numbers = #tpu.dot_dimension_numbers<[1], [0], [0], [1], [0, 0, 1, 1], [], []>} : vector<128x128xbf16>, vector<128x128xbf16>, vector<128x128xf32> -> vector<128x128xf32>
    %cst_7 = arith.constant dense<0.000000e+00> : vector<128x128xf32>
    %19 = tpu.matmul %17, %16, %cst_7 {dimension_numbers = #tpu.dot_dimension_numbers<[1], [0], [0], [1], [0, 0, 1, 1], [], []>} : vector<128x128xbf16>, vector<128x128xbf16>, vector<128x128xf32> -> vector<128x128xf32>
    %20 = arith.mulf %18, %19 : vector<128x128xf32>
    %cst_8 = arith.constant dense<0.000000e+00> : vector<128xf32>
    %21 = vector.multi_reduction <add>, %20, %cst_8 [0] : vector<128x128xf32> to vector<128xf32>
    %22 = vector.shape_cast %21 : vector<128xf32> to vector<1x128xf32>
    %cst_9 = arith.constant 0.000000e+00 : f32
    %23 = vector.broadcast %cst_9 : f32 to vector<1x128xf32>
    %24 = arith.cmpf oge, %5, %23 : vector<1x128xf32>
    %cst_10 = arith.constant 1.000000e+00 : f32
    %cst_11 = arith.constant -1.000000e+00 : f32
    %25 = vector.broadcast %cst_10 : f32 to vector<1x128xf32>
    %26 = vector.broadcast %cst_11 : f32 to vector<1x128xf32>
    %27 = arith.select %24, %25, %26 : vector<1x128xi1>, vector<1x128xf32>
    %28 = arith.mulf %27, %22 : vector<1x128xf32>
    %cst_12 = arith.constant 0.000000e+00 : f32
    %29 = vector.broadcast %cst_12 : f32 to vector<1x128xf32>
    %30 = arith.subf %29, %28 : vector<1x128xf32>
    %31 = math.exp %30 : vector<1x128xf32>
    %cst_13 = arith.constant 1.000000e+00 : f32
    %32 = vector.broadcast %cst_13 : f32 to vector<1x128xf32>
    %33 = arith.addf %32, %31 : vector<1x128xf32>
    %34 = tpu.reciprocal %33 {approx = true} : vector<1x128xf32> -> vector<1x128xf32>
    %cst_14 = arith.constant 9.99999974E-5 : f32
    %35 = vector.broadcast %cst_14 : f32 to vector<1x128xf32>
    %36 = arith.addf %35, %34 : vector<1x128xf32>
    %37 = math.log %36 : vector<1x128xf32>
    %cst_15 = arith.constant 0.000000e+00 : f32
    %38 = vector.broadcast %cst_15 : f32 to vector<1x128xf32>
    %39 = arith.subf %38, %37 : vector<1x128xf32>
    %c0_16 = arith.constant 0 : index
    %c0_17 = arith.constant 0 : index
    %40 = vector.load %arg5[%c0_16, %c0_17] : memref<1x128xf32, #tpu.memory_space<vmem>>, vector<1x128xf32>
    %41 = math.absf %5 : vector<1x128xf32>
    %42 = arith.mulf %41, %39 : vector<1x128xf32>
    %43 = arith.addf %40, %42 : vector<1x128xf32>
    %c0_18 = arith.constant 0 : index
    %c0_19 = arith.constant 0 : index
    %44 = vector.load %arg5[%c0_18, %c0_19] : memref<1x128xf32, #tpu.memory_space<vmem>>, vector<1x128xf32>
    tpu.vector_store %arg5[%c0_18, %c0_19], %43 {strides = array<i32>} : memref<1x128xf32, #tpu.memory_space<vmem>>, vector<1x128xf32>,
    %c0_i32_20 = arith.constant 0 : i32
    %45 = arith.cmpi eq, %arg0, %c0_i32_20 : i32
    %46 = arith.extui %45 : i1 to i32
    %c0_i32_21 = arith.constant 0 : i32
    %47 = arith.cmpi ne, %46, %c0_i32_21 : i32
    scf.if %47 {
      %c0_22 = arith.constant 0 : index
      %c0_23 = arith.constant 0 : index
      %48 = vector.load %arg5[%c0_22, %c0_23] : memref<1x128xf32, #tpu.memory_space<vmem>>, vector<1x128xf32>
      %cst_24 = arith.constant dense<0.000000e+00> : vector<1xf32>
      %49 = vector.multi_reduction <add>, %48, %cst_24 [1] : vector<1x128xf32> to vector<1xf32>
      %50 = vector.shape_cast %49 : vector<1xf32> to vector<1x1xf32>
      %c0_25 = arith.constant 0 : index
      %c0_26 = arith.constant 0 : index
      %51 = vector.load %arg4[%c0_25, %c0_26] : memref<1x1xf32, #tpu.memory_space<vmem>>, vector<1x1xf32>
      tpu.vector_store %arg4[%c0_25, %c0_26], %50 {strides = array<i32>} : memref<1x1xf32, #tpu.memory_space<vmem>>, vector<1x1xf32>,
    } else {
    }
    return
  }
  func.func @transform_0(%arg0: i32) -> (i32, i32) {
    %c0_i32 = arith.constant 0 : i32
    %c0_i32_0 = arith.constant 0 : i32
    return %c0_i32, %arg0 : i32, i32
  }
  func.func @transform_1(%arg0: i32) -> (i32, i32) {
    %c0_i32 = arith.constant 0 : i32
    %c0_i32_0 = arith.constant 0 : i32
    return %c0_i32, %arg0 : i32, i32
  }
  func.func @transform_2(%arg0: i32) -> (i32, i32) {
    %c0_i32 = arith.constant 0 : i32
    %c0_i32_0 = arith.constant 0 : i32
    %c0_i32_1 = arith.constant 0 : i32
    return %c0_i32, %c0_i32_0 : i32, i32
  }
  func.func @transform_3(%arg0: i32) -> (i32, i32) {
    %c0_i32 = arith.constant 0 : i32
    %c0_i32_0 = arith.constant 0 : i32
    %c0_i32_1 = arith.constant 0 : i32
    return %c0_i32, %c0_i32_0 : i32, i32
  }
}

</mosaic_0001>

<llo_original>
// kernel: recon_block_forward.1
$region0: #{recon_block_forward.1}
  #allocation0 [shape = 'u32[]', space=smem, size = 0x4, offset = 0x4, fixed_abs, tag = 'smem constant byte address 0x4 - core index']
  #allocation1 [shape = 'u32[144,128]{1,0:T(1,128)}', space=vmem, size = 0x12000, scoped, tag = 'internal scratch']
  #allocation2 [shape = 'f32[1,128]{1,0:T(1,128)}', space=vmem, size = 0x200, scoped, tag = 'scratch operand']
  %s0 = inlined_call_operand.vmem [shape: s32[2,128], index: 0, kind: input, shape index: {}]
  %s1 = inlined_call_operand.vmem [shape: f32[1,128], index: 1, kind: input, shape index: {}]
  %s2 = inlined_call_operand.vmem [shape: bf16[128,128], index: 2, kind: input, shape index: {}]
  %s3 = inlined_call_operand.hbm [shape: f32[1,1], index: 3, kind: output, shape index: {}]
  %s4 = sld [smem:[#allocation0]]
  $region30: #{recon_block_forward.1} parent=0
    _
  %s6 = ssub.s32 1, %s4
  %s7 = scalar_select 0, %s6, %s4
  $region1: #{recon_block_forward.1} parent=0
    #allocation3 [shape = 'u8[512]{0}', space=vmem, size = 0x400, scoped, tag = 'output window, operand 0, single buffered']
    #allocation4 [shape = 's32[1]{0}', space=sflag, size = 0x4, scoped, tag = 'scoped memory for recon_block_forward.1']
    %8 = vsyncpa [#allocation4], 0
    // Predicated region
    $region2: #{recon_block_forward.1} parent=1 // pred_check
      _
    $region3: #{recon_block_forward.1} parent=1 // pred_check_branch
      %10 = sbr.rel (0) target = $region5
    $region4: #{recon_block_forward.1} parent=1 // pred_region
      _
    $region5: #{recon_block_forward.1} parent=1 // pred_fallthru
      _
    // Predicated region
    $region6: #{recon_block_forward.1} parent=1 // pred_check
      _
    $region7: #{recon_block_forward.1} parent=1 // pred_check_branch
      %12 = sbr.rel (0) target = $region9
    $region8: #{recon_block_forward.1} parent=1 // pred_region
      _
    $region9: #{recon_block_forward.1} parent=1 // pred_fallthru
      _
    // Predicated region
    $region10: #{recon_block_forward.1} parent=1 // pred_check
      _
    $region11: #{recon_block_forward.1} parent=1 // pred_check_branch
      %14 = sbr.rel (0) target = $region13
    $region12: #{recon_block_forward.1} parent=1 // pred_region
      _
    $region13: #{recon_block_forward.1} parent=1 // pred_fallthru
      _
    %p16 = scmp.eq.s32.totalorder 0, 0
    // Predicated region
    $region14: #{recon_block_forward.1} parent=1 // pred_check
      %p17 = pneg %p16
    $region15: #{recon_block_forward.1} parent=1 // pred_check_branch
      %19 = sbr.rel (%p17) target = $region17
    $region16: #{recon_block_forward.1} parent=1 // pred_region
      %20 = vst [vmem:[#allocation2] sm:$0x1] 0.0
    $region17: #{recon_block_forward.1} parent=1 // pred_fallthru
      _
    %v21 = vld [vmem:[%s0] sm:$0x1]
    %v22 = vld [vmem:[%s0 + $0x1] sm:$0x1]
    %v23 = vld [vmem:[%s1] sm:$0x1]
    %v24 = vlaneseq
    %v25 = vshrl.u32 %v24, 7
    %v26 = vadd.s32 %v25, 8
    %v27 = vadd.s32 %v25, 16
    %v28 = vadd.s32 %v25, 24
    %v29 = vadd.s32 %v25, 32
    %v30 = vadd.s32 %v25, 40
    %v31 = vadd.s32 %v25, 48
    %v32 = vadd.s32 %v25, 56
    %v33 = vadd.s32 %v25, 64
    %v34 = vadd.s32 %v25, 72
    %v35 = vadd.s32 %v25, 80
    %v36 = vadd.s32 %v25, 88
    %v37 = vadd.s32 %v25, 96
    %v38 = vadd.s32 %v25, 104
    %v39 = vadd.s32 %v25, 112
    %v40 = vadd.s32 %v25, 120
    %v41 = vlaneseq
    %v42 = vshrl.u32 %v41, 7
    %v43 = vsub.s32 0, %v42
    %v44 = vrot.slane %v21, %v43
    %vm45 = vcmp.eq.s32.totalorder %v25, %v44
    %vm46 = vcmp.eq.s32.totalorder %v26, %v44
    %vm47 = vcmp.eq.s32.totalorder %v27, %v44
    %vm48 = vcmp.eq.s32.totalorder %v28, %v44
    %vm49 = vcmp.eq.s32.totalorder %v29, %v44
    %vm50 = vcmp.eq.s32.totalorder %v30, %v44
    %vm51 = vcmp.eq.s32.totalorder %v31, %v44
    %vm52 = vcmp.eq.s32.totalorder %v32, %v44
    %vm53 = vcmp.eq.s32.totalorder %v33, %v44
    %vm54 = vcmp.eq.s32.totalorder %v34, %v44
    %vm55 = vcmp.eq.s32.totalorder %v35, %v44
    %vm56 = vcmp.eq.s32.totalorder %v36, %v44
    %vm57 = vcmp.eq.s32.totalorder %v37, %v44
    %vm58 = vcmp.eq.s32.totalorder %v38, %v44
    %vm59 = vcmp.eq.s32.totalorder %v39, %v44
    %vm60 = vcmp.eq.s32.totalorder %v40, %v44
    %v61 = vsel %vm45, 1, 0
    %v62 = vsel %vm46, 1, 0
    %v63 = vsel %vm47, 1, 0
    %v64 = vsel %vm48, 1, 0
    %v65 = vsel %vm49, 1, 0
    %v66 = vsel %vm50, 1, 0
    %v67 = vsel %vm51, 1, 0
    %v68 = vsel %vm52, 1, 0
    %v69 = vsel %vm53, 1, 0
    %v70 = vsel %vm54, 1, 0
    %v71 = vsel %vm55, 1, 0
    %v72 = vsel %vm56, 1, 0
    %v73 = vsel %vm57, 1, 0
    %v74 = vsel %vm58, 1, 0
    %v75 = vsel %vm59, 1, 0
    %v76 = vsel %vm60, 1, 0
    %v77 = vcvt.s32.f32 %v61
    %v78 = vcvt.s32.f32 %v62
    %v79 = vcvt.s32.f32 %v63
    %v80 = vcvt.s32.f32 %v64
    %v81 = vcvt.s32.f32 %v65
    %v82 = vcvt.s32.f32 %v66
    %v83 = vcvt.s32.f32 %v67
    %v84 = vcvt.s32.f32 %v68
    %v85 = vcvt.s32.f32 %v69
    %v86 = vcvt.s32.f32 %v70
    %v87 = vcvt.s32.f32 %v71
    %v88 = vcvt.s32.f32 %v72
    %v89 = vcvt.s32.f32 %v73
    %v90 = vcvt.s32.f32 %v74
    %v91 = vcvt.s32.f32 %v75
    %v92 = vcvt.s32.f32 %v76
    %v93 = vpack.c.bf16 %v78, %v77
    %v94 = vpack.c.bf16 %v80, %v79
    %v95 = vpack.c.bf16 %v82, %v81
    %v96 = vpack.c.bf16 %v84, %v83
    %v97 = vpack.c.bf16 %v86, %v85
    %v98 = vpack.c.bf16 %v88, %v87
    %v99 = vpack.c.bf16 %v90, %v89
    %v100 = vpack.c.bf16 %v92, %v91
    %v101 = vlaneseq
    %v102 = vshrl.u32 %v101, 7
    %v103 = vsub.s32 0, %v102
    %v104 = vrot.slane %v22, %v103
    %vm105 = vcmp.eq.s32.totalorder %v25, %v104
    %vm106 = vcmp.eq.s32.totalorder %v26, %v104
    %vm107 = vcmp.eq.s32.totalorder %v27, %v104
    %vm108 = vcmp.eq.s32.totalorder %v28, %v104
    %vm109 = vcmp.eq.s32.totalorder %v29, %v104
    %vm110 = vcmp.eq.s32.totalorder %v30, %v104
    %vm111 = vcmp.eq.s32.totalorder %v31, %v104
    %vm112 = vcmp.eq.s32.totalorder %v32, %v104
    %vm113 = vcmp.eq.s32.totalorder %v33, %v104
    %vm114 = vcmp.eq.s32.totalorder %v34, %v104
    %vm115 = vcmp.eq.s32.totalorder %v35, %v104
    %vm116 = vcmp.eq.s32.totalorder %v36, %v104
    %vm117 = vcmp.eq.s32.totalorder %v37, %v104
    %vm118 = vcmp.eq.s32.totalorder %v38, %v104
    %vm119 = vcmp.eq.s32.totalorder %v39, %v104
    %vm120 = vcmp.eq.s32.totalorder %v40, %v104
    %v121 = vsel %vm105, 1, 0
    %v122 = vsel %vm106, 1, 0
    %v123 = vsel %vm107, 1, 0
    %v124 = vsel %vm108, 1, 0
    %v125 = vsel %vm109, 1, 0
    %v126 = vsel %vm110, 1, 0
    %v127 = vsel %vm111, 1, 0
    %v128 = vsel %vm112, 1, 0
    %v129 = vsel %vm113, 1, 0
    %v130 = vsel %vm114, 1, 0
    %v131 = vsel %vm115, 1, 0
    %v132 = vsel %vm116, 1, 0
    %v133 = vsel %vm117, 1, 0
    %v134 = vsel %vm118, 1, 0
    %v135 = vsel %vm119, 1, 0
    %v136 = vsel %vm120, 1, 0
    %v137 = vcvt.s32.f32 %v121
    %v138 = vcvt.s32.f32 %v122
    %v139 = vcvt.s32.f32 %v123
    %v140 = vcvt.s32.f32 %v124
    %v141 = vcvt.s32.f32 %v125
    %v142 = vcvt.s32.f32 %v126
    %v143 = vcvt.s32.f32 %v127
    %v144 = vcvt.s32.f32 %v128
    %v145 = vcvt.s32.f32 %v129
    %v146 = vcvt.s32.f32 %v130
    %v147 = vcvt.s32.f32 %v131
    %v148 = vcvt.s32.f32 %v132
    %v149 = vcvt.s32.f32 %v133
    %v150 = vcvt.s32.f32 %v134
    %v151 = vcvt.s32.f32 %v135
    %v152 = vcvt.s32.f32 %v136
    %v153 = vpack.c.bf16 %v138, %v137
    %v154 = vpack.c.bf16 %v140, %v139
    %v155 = vpack.c.bf16 %v142, %v141
    %v156 = vpack.c.bf16 %v144, %v143
    %v157 = vpack.c.bf16 %v146, %v145
    %v158 = vpack.c.bf16 %v148, %v147
    %v159 = vpack.c.bf16 %v150, %v149
    %v160 = vpack.c.bf16 %v152, %v151
    %v161 = vld [vmem:[%s2] sm:$0xf]
    %v162 = vld [vmem:[%s2 + $0x4] sm:$0xf]
    %v163 = vld [vmem:[%s2 + $0x8] sm:$0xf]
    %v164 = vld [vmem:[%s2 + $0xc] sm:$0xf]
    %v165 = vld [vmem:[%s2 + $0x10] sm:$0xf]
    %v166 = vld [vmem:[%s2 + $0x14] sm:$0xf]
    %v167 = vld [vmem:[%s2 + $0x18] sm:$0xf]
    %v168 = vld [vmem:[%s2 + $0x1c] sm:$0xf]
    %v169 = vld [vmem:[%s2 + $0x20] sm:$0xf]
    %v170 = vld [vmem:[%s2 + $0x24] sm:$0xf]
    %v171 = vld [vmem:[%s2 + $0x28] sm:$0xf]
    %v172 = vld [vmem:[%s2 + $0x2c] sm:$0xf]
    %v173 = vld [vmem:[%s2 + $0x30] sm:$0xf]
    %v174 = vld [vmem:[%s2 + $0x34] sm:$0xf]
    %v175 = vld [vmem:[%s2 + $0x38] sm:$0xf]
    %v176 = vld [vmem:[%s2 + $0x3c] sm:$0xf]
    %v193 = vunpack.c.l.b16 %v161
    %v194 = vunpack.c.l.b16 %v162
    %v195 = vunpack.c.l.b16 %v163
    %v196 = vunpack.c.l.b16 %v164
    %v197 = vunpack.c.l.b16 %v165
    %v198 = vunpack.c.l.b16 %v166
    %v199 = vunpack.c.l.b16 %v167
    %v200 = vunpack.c.l.b16 %v168
    %v201 = vunpack.c.l.b16 %v169
    %v202 = vunpack.c.l.b16 %v170
    %v203 = vunpack.c.l.b16 %v171
    %v204 = vunpack.c.l.b16 %v172
    %v205 = vunpack.c.l.b16 %v173
    %v206 = vunpack.c.l.b16 %v174
    %v207 = vunpack.c.l.b16 %v175
    %v208 = vunpack.c.l.b16 %v176
    %v209 = vpack.c.b16 %v194, %v193
    %v210 = vpack.c.b16 %v196, %v195
    %v211 = vpack.c.b16 %v198, %v197
    %v212 = vpack.c.b16 %v200, %v199
    %v213 = vpack.c.b16 %v202, %v201
    %v214 = vpack.c.b16 %v204, %v203
    %v215 = vpack.c.b16 %v206, %v205
    %v216 = vpack.c.b16 %v208, %v207
    %225 = vmatprep.subr.bf16.mxu0 0
    %226 = vmatpush1.bf16.msra.mxu0 %v93
    %227 = vmatprep.subr.bf16.mxu0 0
    %228 = vmatpush1.bf16.msra.mxu0 %v94
    %229 = vmatprep.subr.bf16.mxu0 0
    %230 = vmatpush1.bf16.msra.mxu0 %v95
    %231 = vmatprep.subr.bf16.mxu0 0
    %232 = vmatpush1.bf16.msra.mxu0 %v96
    %233 = vmatprep.subr.bf16.mxu0 0
    %234 = vmatpush1.bf16.msra.mxu0 %v97
    %235 = vmatprep.subr.bf16.mxu0 0
    %236 = vmatpush1.bf16.msra.mxu0 %v98
    %237 = vmatprep.subr.bf16.mxu0 0
    %238 = vmatpush1.bf16.msra.mxu0 %v99
    %239 = vmatprep.subr.bf16.mxu0 0
    %240 = vmatpush1.bf16.msra.mxu0 %v100
    %241 = vmatprep.subr.bf16.mxu0 0
    %242 = vmatpush1.bf16.msra.mxu0 0
    %243 = vmatprep.subr.bf16.mxu0 0
    %244 = vmatpush1.bf16.msra.mxu0 0
    %245 = vmatprep.subr.bf16.mxu0 0
    %246 = vmatpush1.bf16.msra.mxu0 0
    %247 = vmatprep.subr.bf16.mxu0 0
    %248 = vmatpush1.bf16.msra.mxu0 0
    %249 = vmatprep.subr.bf16.mxu0 0
    %250 = vmatpush1.bf16.msra.mxu0 0
    %251 = vmatprep.subr.bf16.mxu0 0
    %252 = vmatpush1.bf16.msra.mxu0 0
    %253 = vmatprep.subr.bf16.mxu0 0
    %254 = vmatpush1.bf16.msra.mxu0 0
    %255 = vmatprep.subr.bf16.mxu0 0
    %256 = vmatpush1.bf16.msra.mxu0 0
    %257 = vmatprep.mubr.bf16.mxu0 0
    %258 = vmatmul.mubr.bf16.gmra.mrb[0].mxu0 %v209
    %v259 = vpop.f32.mrb[0].mxu0
    %v260 = vadd.f32 0.0, %v259
    %v261 = vpop.f32.mrb[0].mxu0
    %v262 = vpop.f32.mrb[0].mxu0
    %v263 = vadd.f32 0.0, %v262
    %v264 = vpop.f32.mrb[0].mxu0
    %265 = vmatprep.mubr.bf16.mxu0 0
    %266 = vmatmul.mubr.bf16.gmra.mrb[0].mxu0 %v210
    %v267 = vpop.f32.mrb[0].mxu0
    %v268 = vadd.f32 0.0, %v267
    %v269 = vpop.f32.mrb[0].mxu0
    %v270 = vpop.f32.mrb[0].mxu0
    %v271 = vadd.f32 0.0, %v270
    %v272 = vpop.f32.mrb[0].mxu0
    %273 = vmatprep.mubr.bf16.mxu0 0
    %274 = vmatmul.mubr.bf16.gmra.mrb[0].mxu0 %v211
    %v275 = vpop.f32.mrb[0].mxu0
    %v276 = vadd.f32 0.0, %v275
    %v277 = vpop.f32.mrb[0].mxu0
    %v278 = vpop.f32.mrb[0].mxu0
    %v279 = vadd.f32 0.0, %v278
    %v280 = vpop.f32.mrb[0].mxu0
    %281 = vmatprep.mubr.bf16.mxu0 0
    %282 = vmatmul.mubr.bf16.gmra.mrb[0].mxu0 %v212
    %v283 = vpop.f32.mrb[0].mxu0
    %v284 = vadd.f32 0.0, %v283
    %v285 = vpop.f32.mrb[0].mxu0
    %v286 = vpop.f32.mrb[0].mxu0
    %v287 = vadd.f32 0.0, %v286
    %v288 = vpop.f32.mrb[0].mxu0
    %289 = vmatprep.mubr.bf16.mxu0 0
    %290 = vmatmul.mubr.bf16.gmra.mrb[0].mxu0 %v213
    %v291 = vpop.f32.mrb[0].mxu0
    %v292 = vadd.f32 0.0, %v291
    %v293 = vpop.f32.mrb[0].mxu0
    %v294 = vpop.f32.mrb[0].mxu0
    %v295 = vadd.f32 0.0, %v294
    %v296 = vpop.f32.mrb[0].mxu0
    %297 = vmatprep.mubr.bf16.mxu0 0
    %298 = vmatmul.mubr.bf16.gmra.mrb[0].mxu0 %v214
    %v299 = vpop.f32.mrb[0].mxu0
    %v300 = vadd.f32 0.0, %v299
    %v301 = vpop.f32.mrb[0].mxu0
    %v302 = vpop.f32.mrb[0].mxu0
    %v303 = vadd.f32 0.0, %v302
    %v304 = vpop.f32.mrb[0].mxu0
    %305 = vmatprep.mubr.bf16.mxu0 0
    %306 = vmatmul.mubr.bf16.gmra.mrb[0].mxu0 %v215
    %v307 = vpop.f32.mrb[0].mxu0
    %v308 = vadd.f32 0.0, %v307
    %v309 = vpop.f32.mrb[0].mxu0
    %v310 = vpop.f32.mrb[0].mxu0
    %v311 = vadd.f32 0.0, %v310
    %v312 = vpop.f32.mrb[0].mxu0
    %313 = vmatprep.mubr.bf16.mxu0 0
    %314 = vmatmul.mubr.bf16.gmra.mrb[0].mxu0 %v216
    %v315 = vpop.f32.mrb[0].mxu0
    %v316 = vadd.f32 0.0, %v315
    %v317 = vpop.f32.mrb[0].mxu0
    %v318 = vpop.f32.mrb[0].mxu0
    %v319 = vadd.f32 0.0, %v318
    %v320 = vpop.f32.mrb[0].mxu0
    %321 = vdwg.mxu0
    %322 = vmatprep.subr.bf16.mxu0 0
    %323 = vmatpush1.bf16.msra.mxu0 %v153
    %324 = vmatprep.subr.bf16.mxu0 0
    %325 = vmatpush1.bf16.msra.mxu0 %v154
    %326 = vmatprep.subr.bf16.mxu0 0
    %327 = vmatpush1.bf16.msra.mxu0 %v155
    %328 = vmatprep.subr.bf16.mxu0 0
    %329 = vmatpush1.bf16.msra.mxu0 %v156
    %330 = vmatprep.subr.bf16.mxu0 0
    %331 = vmatpush1.bf16.msra.mxu0 %v157
    %332 = vmatprep.subr.bf16.mxu0 0
    %333 = vmatpush1.bf16.msra.mxu0 %v158
    %334 = vmatprep.subr.bf16.mxu0 0
    %335 = vmatpush1.bf16.msra.mxu0 %v159
    %336 = vmatprep.subr.bf16.mxu0 0
    %337 = vmatpush1.bf16.msra.mxu0 %v160
    %338 = vmatprep.subr.bf16.mxu0 0
    %339 = vmatpush1.bf16.msra.mxu0 0
    %340 = vmatprep.subr.bf16.mxu0 0
    %341 = vmatpush1.bf16.msra.mxu0 0
    %342 = vmatprep.subr.bf16.mxu0 0
    %343 = vmatpush1.bf16.msra.mxu0 0
    %344 = vmatprep.subr.bf16.mxu0 0
    %345 = vmatpush1.bf16.msra.mxu0 0
    %346 = vmatprep.subr.bf16.mxu0 0
    %347 = vmatpush1.bf16.msra.mxu0 0
    %348 = vmatprep.subr.bf16.mxu0 0
    %349 = vmatpush1.bf16.msra.mxu0 0
    %350 = vmatprep.subr.bf16.mxu0 0
    %351 = vmatpush1.bf16.msra.mxu0 0
    %352 = vmatprep.subr.bf16.mxu0 0
    %353 = vmatpush1.bf16.msra.mxu0 0
    %354 = vmatprep.mubr.bf16.mxu0 0
    %355 = vmatmul.mubr.bf16.gmra.mrb[0].mxu0 %v209
    %v356 = vpop.f32.mrb[0].mxu0
    %v357 = vadd.f32 0.0, %v356
    %v358 = vpop.f32.mrb[0].mxu0
    %v359 = vpop.f32.mrb[0].mxu0
    %v360 = vadd.f32 0.0, %v359
    %v361 = vpop.f32.mrb[0].mxu0
    %362 = vmatprep.mubr.bf16.mxu0 0
    %363 = vmatmul.mubr.bf16.gmra.mrb[0].mxu0 %v210
    %v364 = vpop.f32.mrb[0].mxu0
    %v365 = vadd.f32 0.0, %v364
    %v366 = vpop.f32.mrb[0].mxu0
    %v367 = vpop.f32.mrb[0].mxu0
    %v368 = vadd.f32 0.0, %v367
    %v369 = vpop.f32.mrb[0].mxu0
    %370 = vmatprep.mubr.bf16.mxu0 0
    %371 = vmatmul.mubr.bf16.gmra.mrb[0].mxu0 %v211
    %v372 = vpop.f32.mrb[0].mxu0
    %v373 = vadd.f32 0.0, %v372
    %v374 = vpop.f32.mrb[0].mxu0
    %v375 = vpop.f32.mrb[0].mxu0
    %v376 = vadd.f32 0.0, %v375
    %v377 = vpop.f32.mrb[0].mxu0
    %378 = vmatprep.mubr.bf16.mxu0 0
    %379 = vmatmul.mubr.bf16.gmra.mrb[0].mxu0 %v212
    %v380 = vpop.f32.mrb[0].mxu0
    %v381 = vadd.f32 0.0, %v380
    %v382 = vpop.f32.mrb[0].mxu0
    %v383 = vpop.f32.mrb[0].mxu0
    %v384 = vadd.f32 0.0, %v383
    %v385 = vpop.f32.mrb[0].mxu0
    %386 = vmatprep.mubr.bf16.mxu0 0
    %387 = vmatmul.mubr.bf16.gmra.mrb[0].mxu0 %v213
    %v388 = vpop.f32.mrb[0].mxu0
    %v389 = vadd.f32 0.0, %v388
    %v390 = vpop.f32.mrb[0].mxu0
    %v391 = vpop.f32.mrb[0].mxu0
    %v392 = vadd.f32 0.0, %v391
    %v393 = vpop.f32.mrb[0].mxu0
    %394 = vmatprep.mubr.bf16.mxu0 0
    %395 = vmatmul.mubr.bf16.gmra.mrb[0].mxu0 %v214
    %v396 = vpop.f32.mrb[0].mxu0
    %v397 = vadd.f32 0.0, %v396
    %v398 = vpop.f32.mrb[0].mxu0
    %v399 = vpop.f32.mrb[0].mxu0
    %v400 = vadd.f32 0.0, %v399
    %v401 = vpop.f32.mrb[0].mxu0
    %402 = vmatprep.mubr.bf16.mxu0 0
    %403 = vmatmul.mubr.bf16.gmra.mrb[0].mxu0 %v215
    %v404 = vpop.f32.mrb[0].mxu0
    %v405 = vadd.f32 0.0, %v404
    %v406 = vpop.f32.mrb[0].mxu0
    %v407 = vpop.f32.mrb[0].mxu0
    %v408 = vadd.f32 0.0, %v407
    %v409 = vpop.f32.mrb[0].mxu0
    %410 = vmatprep.mubr.bf16.mxu0 0
    %411 = vmatmul.mubr.bf16.gmra.mrb[0].mxu0 %v216
    %v412 = vpop.f32.mrb[0].mxu0
    %v413 = vadd.f32 0.0, %v412
    %v414 = vpop.f32.mrb[0].mxu0
    %v415 = vpop.f32.mrb[0].mxu0
    %v416 = vadd.f32 0.0, %v415
    %v417 = vpop.f32.mrb[0].mxu0
    %418 = vdwg.mxu0
    %v419 = vmul.f32 %v260, %v357
    %v420 = vmul.f32 %v263, %v360
    %v421 = vmul.f32 %v268, %v365
    %v422 = vmul.f32 %v271, %v368
    %v423 = vmul.f32 %v276, %v373
    %v424 = vmul.f32 %v279, %v376
    %v425 = vmul.f32 %v284, %v381
    %v426 = vmul.f32 %v287, %v384
    %v427 = vmul.f32 %v292, %v389
    %v428 = vmul.f32 %v295, %v392
    %v429 = vmul.f32 %v300, %v397
    %v430 = vmul.f32 %v303, %v400
    %v431 = vmul.f32 %v308, %v405
    %v432 = vmul.f32 %v311, %v408
    %v433 = vmul.f32 %v316, %v413
    %v434 = vmul.f32 %v319, %v416
    %v435 = vadd.f32 %v419, %v420
    %v436 = vadd.f32 %v435, %v421
    %v437 = vadd.f32 %v436, %v422
    %v438 = vadd.f32 %v437, %v423
    %v439 = vadd.f32 %v438, %v424
    %v440 = vadd.f32 %v439, %v425
    %v441 = vadd.f32 %v440, %v426
    %v442 = vadd.f32 %v441, %v427
    %v443 = vadd.f32 %v442, %v428
    %v444 = vadd.f32 %v443, %v429
    %v445 = vadd.f32 %v444, %v430
    %v446 = vadd.f32 %v445, %v431
    %v447 = vadd.f32 %v446, %v432
    %v448 = vadd.f32 %v447, %v433
    %v449 = vadd.f32 %v448, %v434
    %v450 = vrot.slane %v449, 4
    %v451 = vadd.f32 %v449, %v450
    %v452 = vrot.slane %v451, 2
    %v453 = vadd.f32 %v451, %v452
    %v454 = vrot.slane %v453, 1
    %v455 = vadd.f32 %v453, %v454
    %vm456 = vcmp.ge.f32.partialorder %v23, 0.0
    %v457 = vsel %vm456, 1.0, -1.0
    %v458 = vmul.f32 %v457, %v455
    %v459 = vsub.f32 0.0, %v458
    %v460 = vmul.f32 %v459, 1.442695
    %v461 = vpow.pop %v460
    %v462 = vadd.f32 %v461, 1.0
    %v463 = vrcp.pop %v462
    %v464 = vadd.f32 %v463, 0.0001
    %v465 = vlog2.pop %v464
    %v466 = vmul.f32 %v465, 0.6931472
    %v467 = vsub.f32 0.0, %v466
    %v468 = vld [vmem:[#allocation2] sm:$0x1]
    %v469 = vand.u32 2147483647, %v23
    %v470 = vmul.f32 %v469, %v467
    %v471 = vadd.f32 %v468, %v470
    %472 = vst [vmem:[#allocation2] sm:$0x1] %v471
    // Predicated region
    $region18: #{recon_block_forward.1} parent=1 // pred_check
      %p473 = pneg %p16
    $region19: #{recon_block_forward.1} parent=1 // pred_check_branch
      %475 = sbr.rel (%p473) target = $region21
    $region20: #{recon_block_forward.1} parent=1 // pred_region
      %v476 = vld [vmem:[#allocation2] sm:$0x1]
      %vm477 = vcmask 1040384
      %v478 = vsel %vm477, %v476, 0.0
      %479 = vadd.xlane.f32.xlu0 %v478
      %v480 = vpop.xlane.xlu0 %479
      %vm481 = vcmask 0
      %482 = vst.msk [vmem:[#allocation3] sm:$0x1] %vm481, %v480
    $region21: #{recon_block_forward.1} parent=1 // pred_fallthru
      _
    // Predicated region
    $region22: #{recon_block_forward.1} parent=1 // pred_check
      _
    $region23: #{recon_block_forward.1} parent=1 // pred_check_branch
      %484 = sbr.rel (0) target = $region25
    $region24: #{recon_block_forward.1} parent=1 // pred_region
      %s486 = ssub.s32 16, 16
      %487 = vsyncadd [#allocation4], %s486
      %s489 = sshll.u32 [#allocation3], 4
      %s490 = int_to_ptr.vmem [resolvable:$true] %s489
      %492 = dma.vmem_to_hbm [thread:$0]  %s490, 16, %s3, [#allocation4]
    $region25: #{recon_block_forward.1} parent=1 // pred_fallthru
      _
    // Predicated region
    $region26: #{recon_block_forward.1} parent=1 // pred_check
      _
    $region27: #{recon_block_forward.1} parent=1 // pred_check_branch
      %494 = sbr.rel (0) target = $region29
    $region28: #{recon_block_forward.1} parent=1 // pred_region
      %495 = dma.done [#allocation4], 16
    $region29: #{recon_block_forward.1} parent=1 // pred_fallthru
      _
    %496 = vsyncpa [#allocation4], 1

</llo_original>
